<compile_context>
chip_gen: v7x
topology: tpu7x:2x2x1
jax: 0.10.0
libtpu: 0.0.40
codegen_flags: <defaults>
</compile_context>

<pallas_src>
import functools

import jax
import jax.numpy as jnp
import numpy as np
from jax.experimental import pallas as pl
from jax.experimental.pallas import tpu as pltpu


def _csdn_kernel(x_ref, wdw_ref, bdw_ref, wpw_ref, bpw_ref, out_ref, *, H, W):
    # x_ref   : (Cin, H*W)   one image, channels on sublanes, flat spatial on lanes
    # wdw_ref : (Cin, 9)     depthwise taps, column index = kh*3 + kw
    # bdw_ref : (Cin, 1)     depthwise bias
    # wpw_ref : (Cout, Cin)  pointwise (1x1) weights
    # bpw_ref : (Cout, 1)    pointwise bias
    # out_ref : (Cout, H*W)
    Cin, HW = x_ref.shape
    Cout = out_ref.shape[0]

    x = x_ref[...].astype(jnp.float32)
    wdw = wdw_ref[...].astype(jnp.float32)

    # Border masks on the flattened spatial index (computed once, hoisted out
    # of the tap loop).  h-boundaries are plain comparisons on the flat index;
    # w-boundaries need the intra-row offset, a bitwise AND when W is a power
    # of two (true for this model's shapes).
    flat = jax.lax.broadcasted_iota(jnp.int32, (Cin, HW), 1)
    if W & (W - 1) == 0:
        w_idx = jnp.bitwise_and(flat, W - 1)
    else:
        w_idx = flat % W  # TODO(synk): verify vector integer-rem lowering for non-pow2 W
    h_masks = (flat >= W, None, flat < (H - 1) * W)   # dh = -1, 0, +1
    w_masks = (w_idx >= 1, None, w_idx <= W - 2)      # dw = -1, 0, +1

    # Depthwise 3x3, padding=1.
    # tap(dh,dw)[c, h*W+w] = x[c, (h+dh)*W + (w+dw)], realised as a lane
    # rotation of the flat image; invalid (border / wrapped) positions are
    # zeroed by the masks.
    acc = jnp.zeros((Cin, HW), jnp.float32)
    for kh, dh in enumerate((-1, 0, 1)):
        for kw, dw in enumerate((-1, 0, 1)):
            shift = dh * W + dw
            tap = x if shift == 0 else pltpu.roll(x, shift=(-shift) % HW, axis=1)
            mh, mw = h_masks[kh], w_masks[kw]
            if mh is not None and mw is not None:
                tap = jnp.where(jnp.logical_and(mh, mw), tap, 0.0)
            elif mh is not None:
                tap = jnp.where(mh, tap, 0.0)
            elif mw is not None:
                tap = jnp.where(mw, tap, 0.0)
            j = kh * 3 + kw
            acc = acc + tap * wdw[:, j:j + 1]          # (Cin,1) bcast over lanes
    acc = acc + bdw_ref[...].astype(jnp.float32)        # depthwise bias

    # Pointwise 1x1 conv == channel mix over the sublane (channel) axis.
    wpw = wpw_ref[...].astype(jnp.float32)               # (Cout, Cin)
    if Cin <= 8:
        # Tiny channel count: Cin broadcast-FMAs on the VPU; avoids an almost
        # idle MXU pass and keeps acc in its natural layout (no reshape).
        out = jnp.zeros((Cout, HW), jnp.float32)
        for c in range(Cin):
            out = out + wpw[:, c:c + 1] * acc[c:c + 1, :]
    else:
        # Wider channels: single matmul; acc is already (K, N) = (sublane,
        # lane), so no transpose / reshape / relayout is needed.
        out = jnp.dot(wpw, acc, preferred_element_type=jnp.float32)
    out = out + bpw_ref[...].astype(jnp.float32)          # pointwise bias

    out_ref[...] = out.astype(out_ref.dtype)


def csdn_tem_forward(x_nchw, w_dw, b_dw, w_pw, b_pw, dropout=0.0):
    """Forward pass of CSDN_Tem (eval mode).

    x_nchw : (N, Cin, H, W)       float32
    w_dw   : (Cin, 1, 3, 3)       depthwise conv weight (PyTorch layout)
    b_dw   : (Cin,)
    w_pw   : (Cout, Cin, 1, 1)    pointwise conv weight (PyTorch layout)
    b_pw   : (Cout,)
    returns: (N, Cout, H, W)
    """
    N, Cin, H, W = x_nchw.shape
    Cout = w_pw.shape[0]
    HW = H * W

    # Wrapper-side reshapes only merge/split trailing contiguous dims:
    # no transposes, no padding -> no extra HBM passes.
    x_flat = x_nchw.reshape(N, Cin, HW)
    wdw2 = w_dw.reshape(Cin, 9)
    bdw2 = b_dw.reshape(Cin, 1)
    wpw2 = w_pw.reshape(Cout, Cin)
    bpw2 = b_pw.reshape(Cout, 1)

    out_flat = pl.pallas_call(
        functools.partial(_csdn_kernel, H=H, W=W),
        out_shape=jax.ShapeDtypeStruct((N, Cout, HW), x_nchw.dtype),
        grid_spec=pltpu.PrefetchScalarGridSpec(
            num_scalar_prefetch=0,
            grid=(N,),
            in_specs=[
                pl.BlockSpec((pl.Squeezed(), Cin, HW), lambda n: (n, 0, 0)),
                pl.BlockSpec((Cin, 9), lambda n: (0, 0)),
                pl.BlockSpec((Cin, 1), lambda n: (0, 0)),
                pl.BlockSpec((Cout, Cin), lambda n: (0, 0)),
                pl.BlockSpec((Cout, 1), lambda n: (0, 0)),
            ],
            out_specs=pl.BlockSpec((pl.Squeezed(), Cout, HW),
                                   lambda n: (n, 0, 0)),
        ),
        compiler_params=pltpu.CompilerParams(
            dimension_semantics=("parallel",)),
    )(x_flat, wdw2, bdw2, wpw2, bpw2)

    # dropout > 0: eval-mode dropout is identity (see TODO at top of file).
    return out_flat.reshape(N, Cout, H, W)


def _reference_forward(x_nchw, w_dw, b_dw, w_pw, b_pw):
    """Pure-JAX reference (lax conv) mirroring nn.Conv2d semantics."""
    Cin = x_nchw.shape[1]
    out = jax.lax.conv_general_dilated(
        x_nchw, w_dw, window_strides=(1, 1), padding=((1, 1), (1, 1)),
        dimension_numbers=("NCHW", "OIHW", "NCHW"),
        feature_group_count=Cin, precision=jax.lax.Precision.HIGHEST)
    out = out + b_dw[None, :, None, None]
    out = jax.lax.conv_general_dilated(
        out, w_pw, window_strides=(1, 1), padding="VALID",
        dimension_numbers=("NCHW", "OIHW", "NCHW"),
        precision=jax.lax.Precision.HIGHEST)
    out = out + b_pw[None, :, None, None]
    return out


if __name__ == "__main__":
    # CSDN_Tem(in_ch=4, out_ch=8, dropout=0.0) at a small test shape.
    N, Cin, Cout, H, W = 2, 4, 8, 16, 16
    dropout = 0.0

    key = jax.random.PRNGKey(0)
    kx, k1, k2, k3, k4 = jax.random.split(key, 5)

    x = jax.random.normal(kx, (N, Cin, H, W), dtype=jnp.float32)
    # Deterministic parameter init (shapes match nn.Conv2d in CSDN_Tem.__init__).
    w_dw = jax.random.normal(k1, (Cin, 1, 3, 3), dtype=jnp.float32) * 0.2
    b_dw = jax.random.normal(k2, (Cin,), dtype=jnp.float32) * 0.1
    w_pw = jax.random.normal(k3, (Cout, Cin, 1, 1), dtype=jnp.float32) * 0.2
    b_pw = jax.random.normal(k4, (Cout,), dtype=jnp.float32) * 0.1

    out = csdn_tem_forward(x, w_dw, b_dw, w_pw, b_pw, dropout=dropout)
    out = jax.block_until_ready(out)

    ref = jax.block_until_ready(_reference_forward(x, w_dw, b_dw, w_pw, b_pw))
    assert out.shape == (N, Cout, H, W)
    np.testing.assert_allclose(np.asarray(out), np.asarray(ref),
                               rtol=1e-5, atol=1e-5)
    print("KERNEL_OK")
</pallas_src>

<mosaic_0001>
module attributes {stable_mosaic.version = 11 : i64} {
  func.func @_csdn_kernel(%arg0: i32, %arg1: memref<1x4x256xf32, #tpu.memory_space<vmem>>, %arg2: memref<4x9xf32, #tpu.memory_space<vmem>>, %arg3: memref<4x1xf32, #tpu.memory_space<vmem>>, %arg4: memref<8x4xf32, #tpu.memory_space<vmem>>, %arg5: memref<8x1xf32, #tpu.memory_space<vmem>>, %arg6: memref<1x8x256xf32, #tpu.memory_space<vmem>>) attributes {dimension_semantics = [#tpu.dimension_semantics<parallel>], iteration_bounds = array<i64: 2>, scalar_prefetch = 0 : i64, scratch_operands = 0 : i64, tpu.core_type = #tpu.core_type<tc>, window_params = [{transform_indices = @transform_0, window_bounds = array<i64: 1, 4, 256>}, {pipeline_mode = #tpu.pipeline_mode<synchronous>, transform_indices = @transform_1, window_bounds = array<i64: 4, 9>}, {pipeline_mode = #tpu.pipeline_mode<synchronous>, transform_indices = @transform_2, window_bounds = array<i64: 4, 1>}, {pipeline_mode = #tpu.pipeline_mode<synchronous>, transform_indices = @transform_3, window_bounds = array<i64: 8, 4>}, {pipeline_mode = #tpu.pipeline_mode<synchronous>, transform_indices = @transform_4, window_bounds = array<i64: 8, 1>}, {transform_indices = @transform_5, window_bounds = array<i64: 1, 8, 256>}]} {
    %c0 = arith.constant 0 : index
    %c0_0 = arith.constant 0 : index
    %c0_1 = arith.constant 0 : index
    %0 = vector.load %arg1[%c0, %c0_0, %c0_1] : memref<1x4x256xf32, #tpu.memory_space<vmem>>, vector<1x4x256xf32>
    %1 = vector.shape_cast %0 : vector<1x4x256xf32> to vector<4x256xf32>
    %c0_2 = arith.constant 0 : index
    %c0_3 = arith.constant 0 : index
    %2 = vector.load %arg2[%c0_2, %c0_3] : memref<4x9xf32, #tpu.memory_space<vmem>>, vector<4x9xf32>
    %3 = tpu.iota {dimensions = array<i32: 1>} : vector<4x256xi32>
    %c15_i32 = arith.constant 15 : i32
    %4 = vector.broadcast %c15_i32 : i32 to vector<4x256xi32>
    %5 = arith.andi %3, %4 : vector<4x256xi32>
    %c16_i32 = arith.constant 16 : i32
    %6 = vector.broadcast %c16_i32 : i32 to vector<4x256xi32>
    %7 = arith.cmpi sge, %3, %6 : vector<4x256xi32>
    %c240_i32 = arith.constant 240 : i32
    %8 = vector.broadcast %c240_i32 : i32 to vector<4x256xi32>
    %9 = arith.cmpi slt, %3, %8 : vector<4x256xi32>
    %c1_i32 = arith.constant 1 : i32
    %10 = vector.broadcast %c1_i32 : i32 to vector<4x256xi32>
    %11 = arith.cmpi sge, %5, %10 : vector<4x256xi32>
    %c14_i32 = arith.constant 14 : i32
    %12 = vector.broadcast %c14_i32 : i32 to vector<4x256xi32>
    %13 = arith.cmpi sle, %5, %12 : vector<4x256xi32>
    %cst = arith.constant 0.000000e+00 : f32
    %14 = vector.broadcast %cst : f32 to vector<4x256xf32>
    %c17_i32 = arith.constant 17 : i32
    %15 = tpu.dynamic_rotate %1 by %c17_i32 dim 1 : vector<4x256xf32>, i32 -> vector<4x256xf32>
    %16 = arith.andi %7, %11 : vector<4x256xi1>
    %cst_4 = arith.constant 0.000000e+00 : f32
    %17 = vector.broadcast %cst_4 : f32 to vector<4x256xf32>
    %18 = arith.select %16, %15, %17 : vector<4x256xi1>, vector<4x256xf32>
    %19 = vector.extract_strided_slice %2 {offsets = [0, 0], sizes = [4, 1], strides = [1, 1]} : vector<4x9xf32> to vector<4x1xf32>
    %20 = vector.broadcast %19 : vector<4x1xf32> to vector<4x256xf32>
    %21 = arith.mulf %18, %20 : vector<4x256xf32>
    %22 = arith.addf %14, %21 : vector<4x256xf32>
    %c16_i32_5 = arith.constant 16 : i32
    %23 = tpu.dynamic_rotate %1 by %c16_i32_5 dim 1 : vector<4x256xf32>, i32 -> vector<4x256xf32>
    %cst_6 = arith.constant 0.000000e+00 : f32
    %24 = vector.broadcast %cst_6 : f32 to vector<4x256xf32>
    %25 = arith.select %7, %23, %24 : vector<4x256xi1>, vector<4x256xf32>
    %26 = vector.extract_strided_slice %2 {offsets = [0, 1], sizes = [4, 1], strides = [1, 1]} : vector<4x9xf32> to vector<4x1xf32>
    %27 = vector.broadcast %26 : vector<4x1xf32> to vector<4x256xf32>
    %28 = arith.mulf %25, %27 : vector<4x256xf32>
    %29 = arith.addf %22, %28 : vector<4x256xf32>
    %c15_i32_7 = arith.constant 15 : i32
    %30 = tpu.dynamic_rotate %1 by %c15_i32_7 dim 1 : vector<4x256xf32>, i32 -> vector<4x256xf32>
    %31 = arith.andi %7, %13 : vector<4x256xi1>
    %cst_8 = arith.constant 0.000000e+00 : f32
    %32 = vector.broadcast %cst_8 : f32 to vector<4x256xf32>
    %33 = arith.select %31, %30, %32 : vector<4x256xi1>, vector<4x256xf32>
    %34 = vector.extract_strided_slice %2 {offsets = [0, 2], sizes = [4, 1], strides = [1, 1]} : vector<4x9xf32> to vector<4x1xf32>
    %35 = vector.broadcast %34 : vector<4x1xf32> to vector<4x256xf32>
    %36 = arith.mulf %33, %35 : vector<4x256xf32>
    %37 = arith.addf %29, %36 : vector<4x256xf32>
    %c1_i32_9 = arith.constant 1 : i32
    %38 = tpu.dynamic_rotate %1 by %c1_i32_9 dim 1 : vector<4x256xf32>, i32 -> vector<4x256xf32>
    %cst_10 = arith.constant 0.000000e+00 : f32
    %39 = vector.broadcast %cst_10 : f32 to vector<4x256xf32>
    %40 = arith.select %11, %38, %39 : vector<4x256xi1>, vector<4x256xf32>
    %41 = vector.extract_strided_slice %2 {offsets = [0, 3], sizes = [4, 1], strides = [1, 1]} : vector<4x9xf32> to vector<4x1xf32>
    %42 = vector.broadcast %41 : vector<4x1xf32> to vector<4x256xf32>
    %43 = arith.mulf %40, %42 : vector<4x256xf32>
    %44 = arith.addf %37, %43 : vector<4x256xf32>
    %45 = vector.extract_strided_slice %2 {offsets = [0, 4], sizes = [4, 1], strides = [1, 1]} : vector<4x9xf32> to vector<4x1xf32>
    %46 = vector.broadcast %45 : vector<4x1xf32> to vector<4x256xf32>
    %47 = arith.mulf %1, %46 : vector<4x256xf32>
    %48 = arith.addf %44, %47 : vector<4x256xf32>
    %c255_i32 = arith.constant 255 : i32
    %49 = tpu.dynamic_rotate %1 by %c255_i32 dim 1 : vector<4x256xf32>, i32 -> vector<4x256xf32>
    %cst_11 = arith.constant 0.000000e+00 : f32
    %50 = vector.broadcast %cst_11 : f32 to vector<4x256xf32>
    %51 = arith.select %13, %49, %50 : vector<4x256xi1>, vector<4x256xf32>
    %52 = vector.extract_strided_slice %2 {offsets = [0, 5], sizes = [4, 1], strides = [1, 1]} : vector<4x9xf32> to vector<4x1xf32>
    %53 = vector.broadcast %52 : vector<4x1xf32> to vector<4x256xf32>
    %54 = arith.mulf %51, %53 : vector<4x256xf32>
    %55 = arith.addf %48, %54 : vector<4x256xf32>
    %c241_i32 = arith.constant 241 : i32
    %56 = tpu.dynamic_rotate %1 by %c241_i32 dim 1 : vector<4x256xf32>, i32 -> vector<4x256xf32>
    %57 = arith.andi %9, %11 : vector<4x256xi1>
    %cst_12 = arith.constant 0.000000e+00 : f32
    %58 = vector.broadcast %cst_12 : f32 to vector<4x256xf32>
    %59 = arith.select %57, %56, %58 : vector<4x256xi1>, vector<4x256xf32>
    %60 = vector.extract_strided_slice %2 {offsets = [0, 6], sizes = [4, 1], strides = [1, 1]} : vector<4x9xf32> to vector<4x1xf32>
    %61 = vector.broadcast %60 : vector<4x1xf32> to vector<4x256xf32>
    %62 = arith.mulf %59, %61 : vector<4x256xf32>
    %63 = arith.addf %55, %62 : vector<4x256xf32>
    %c240_i32_13 = arith.constant 240 : i32
    %64 = tpu.dynamic_rotate %1 by %c240_i32_13 dim 1 : vector<4x256xf32>, i32 -> vector<4x256xf32>
    %cst_14 = arith.constant 0.000000e+00 : f32
    %65 = vector.broadcast %cst_14 : f32 to vector<4x256xf32>
    %66 = arith.select %9, %64, %65 : vector<4x256xi1>, vector<4x256xf32>
    %67 = vector.extract_strided_slice %2 {offsets = [0, 7], sizes = [4, 1], strides = [1, 1]} : vector<4x9xf32> to vector<4x1xf32>
    %68 = vector.broadcast %67 : vector<4x1xf32> to vector<4x256xf32>
    %69 = arith.mulf %66, %68 : vector<4x256xf32>
    %70 = arith.addf %63, %69 : vector<4x256xf32>
    %c239_i32 = arith.constant 239 : i32
    %71 = tpu.dynamic_rotate %1 by %c239_i32 dim 1 : vector<4x256xf32>, i32 -> vector<4x256xf32>
    %72 = arith.andi %9, %13 : vector<4x256xi1>
    %cst_15 = arith.constant 0.000000e+00 : f32
    %73 = vector.broadcast %cst_15 : f32 to vector<4x256xf32>
    %74 = arith.select %72, %71, %73 : vector<4x256xi1>, vector<4x256xf32>
    %75 = vector.extract_strided_slice %2 {offsets = [0, 8], sizes = [4, 1], strides = [1, 1]} : vector<4x9xf32> to vector<4x1xf32>
    %76 = vector.broadcast %75 : vector<4x1xf32> to vector<4x256xf32>
    %77 = arith.mulf %74, %76 : vector<4x256xf32>
    %78 = arith.addf %70, %77 : vector<4x256xf32>
    %c0_16 = arith.constant 0 : index
    %c0_17 = arith.constant 0 : index
    %79 = vector.load %arg3[%c0_16, %c0_17] : memref<4x1xf32, #tpu.memory_space<vmem>>, vector<4x1xf32>
    %80 = vector.broadcast %79 : vector<4x1xf32> to vector<4x256xf32>
    %81 = arith.addf %78, %80 : vector<4x256xf32>
    %c0_18 = arith.constant 0 : index
    %c0_19 = arith.constant 0 : index
    %82 = vector.load %arg4[%c0_18, %c0_19] : memref<8x4xf32, #tpu.memory_space<vmem>>, vector<8x4xf32>
    %cst_20 = arith.constant 0.000000e+00 : f32
    %83 = vector.broadcast %cst_20 : f32 to vector<8x256xf32>
    %84 = vector.extract_strided_slice %82 {offsets = [0, 0], sizes = [8, 1], strides = [1, 1]} : vector<8x4xf32> to vector<8x1xf32>
    %85 = vector.extract_strided_slice %81 {offsets = [0, 0], sizes = [1, 256], strides = [1, 1]} : vector<4x256xf32> to vector<1x256xf32>
    %86 = vector.broadcast %84 : vector<8x1xf32> to vector<8x256xf32>
    %87 = vector.broadcast %85 : vector<1x256xf32> to vector<8x256xf32>
    %88 = arith.mulf %86, %87 : vector<8x256xf32>
    %89 = arith.addf %83, %88 : vector<8x256xf32>
    %90 = vector.extract_strided_slice %82 {offsets = [0, 1], sizes = [8, 1], strides = [1, 1]} : vector<8x4xf32> to vector<8x1xf32>
    %91 = vector.extract_strided_slice %81 {offsets = [1, 0], sizes = [1, 256], strides = [1, 1]} : vector<4x256xf32> to vector<1x256xf32>
    %92 = vector.broadcast %90 : vector<8x1xf32> to vector<8x256xf32>
    %93 = vector.broadcast %91 : vector<1x256xf32> to vector<8x256xf32>
    %94 = arith.mulf %92, %93 : vector<8x256xf32>
    %95 = arith.addf %89, %94 : vector<8x256xf32>
    %96 = vector.extract_strided_slice %82 {offsets = [0, 2], sizes = [8, 1], strides = [1, 1]} : vector<8x4xf32> to vector<8x1xf32>
    %97 = vector.extract_strided_slice %81 {offsets = [2, 0], sizes = [1, 256], strides = [1, 1]} : vector<4x256xf32> to vector<1x256xf32>
    %98 = vector.broadcast %96 : vector<8x1xf32> to vector<8x256xf32>
    %99 = vector.broadcast %97 : vector<1x256xf32> to vector<8x256xf32>
    %100 = arith.mulf %98, %99 : vector<8x256xf32>
    %101 = arith.addf %95, %100 : vector<8x256xf32>
    %102 = vector.extract_strided_slice %82 {offsets = [0, 3], sizes = [8, 1], strides = [1, 1]} : vector<8x4xf32> to vector<8x1xf32>
    %103 = vector.extract_strided_slice %81 {offsets = [3, 0], sizes = [1, 256], strides = [1, 1]} : vector<4x256xf32> to vector<1x256xf32>
    %104 = vector.broadcast %102 : vector<8x1xf32> to vector<8x256xf32>
    %105 = vector.broadcast %103 : vector<1x256xf32> to vector<8x256xf32>
    %106 = arith.mulf %104, %105 : vector<8x256xf32>
    %107 = arith.addf %101, %106 : vector<8x256xf32>
    %c0_21 = arith.constant 0 : index
    %c0_22 = arith.constant 0 : index
    %108 = vector.load %arg5[%c0_21, %c0_22] : memref<8x1xf32, #tpu.memory_space<vmem>>, vector<8x1xf32>
    %109 = vector.broadcast %108 : vector<8x1xf32> to vector<8x256xf32>
    %110 = arith.addf %107, %109 : vector<8x256xf32>
    %c0_23 = arith.constant 0 : index
    %c0_24 = arith.constant 0 : index
    %c0_25 = arith.constant 0 : index
    %111 = vector.load %arg6[%c0_23, %c0_24, %c0_25] : memref<1x8x256xf32, #tpu.memory_space<vmem>>, vector<1x8x256xf32>
    %112 = vector.shape_cast %111 : vector<1x8x256xf32> to vector<8x256xf32>
    %113 = vector.shape_cast %110 : vector<8x256xf32> to vector<1x8x256xf32>
    tpu.vector_store %arg6[%c0_23, %c0_24, %c0_25], %113 {strides = array<i32>} : memref<1x8x256xf32, #tpu.memory_space<vmem>>, vector<1x8x256xf32>,
    return
  }
  func.func @transform_0(%arg0: i32) -> (i32, i32, i32) {
    %c0_i32 = arith.constant 0 : i32
    %c0_i32_0 = arith.constant 0 : i32
    %c0_i32_1 = arith.constant 0 : i32
    return %arg0, %c0_i32, %c0_i32_0 : i32, i32, i32
  }
  func.func @transform_1(%arg0: i32) -> (i32, i32) {
    %c0_i32 = arith.constant 0 : i32
    %c0_i32_0 = arith.constant 0 : i32
    %c0_i32_1 = arith.constant 0 : i32
    return %c0_i32, %c0_i32_0 : i32, i32
  }
  func.func @transform_2(%arg0: i32) -> (i32, i32) {
    %c0_i32 = arith.constant 0 : i32
    %c0_i32_0 = arith.constant 0 : i32
    %c0_i32_1 = arith.constant 0 : i32
    return %c0_i32, %c0_i32_0 : i32, i32
  }
  func.func @transform_3(%arg0: i32) -> (i32, i32) {
    %c0_i32 = arith.constant 0 : i32
    %c0_i32_0 = arith.constant 0 : i32
    %c0_i32_1 = arith.constant 0 : i32
    return %c0_i32, %c0_i32_0 : i32, i32
  }
  func.func @transform_4(%arg0: i32) -> (i32, i32) {
    %c0_i32 = arith.constant 0 : i32
    %c0_i32_0 = arith.constant 0 : i32
    %c0_i32_1 = arith.constant 0 : i32
    return %c0_i32, %c0_i32_0 : i32, i32
  }
  func.func @transform_5(%arg0: i32) -> (i32, i32, i32) {
    %c0_i32 = arith.constant 0 : i32
    %c0_i32_0 = arith.constant 0 : i32
    %c0_i32_1 = arith.constant 0 : i32
    return %arg0, %c0_i32, %c0_i32_0 : i32, i32, i32
  }
}

</mosaic_0001>

<llo_original>
// kernel: tpu_custom_call.1
$region0: #{tpu_custom_call.1}
  #allocation0 [shape = 'u32[]', space=smem, size = 0x4, offset = 0x4, fixed_abs, tag = 'smem constant byte address 0x4 - core index']
  #allocation1 [shape = 'u32[144,128]{1,0:T(1,128)}', space=vmem, size = 0x12000, scoped, tag = 'internal scratch']
  %s0 = inlined_call_operand.vmem [shape: f32[2,4,256], index: 0, kind: input, shape index: {}]
  %s1 = inlined_call_operand.vmem [shape: f32[4,9], index: 1, kind: input, shape index: {}]
  %s2 = inlined_call_operand.vmem [shape: f32[4,1], index: 2, kind: input, shape index: {}]
  %s3 = inlined_call_operand.vmem [shape: f32[8,4], index: 3, kind: input, shape index: {}]
  %s4 = inlined_call_operand.vmem [shape: f32[8,1], index: 4, kind: input, shape index: {}]
  %s5 = inlined_call_operand.hbm [shape: f32[2,8,256], index: 5, kind: output, shape index: {}]
  %s6 = sld [smem:[#allocation0]]
  $region53: #{tpu_custom_call.1} parent=0
    _
  %s8 = ssub.s32 1, %s6
  %s9 = scalar_select 0, %s8, %s6
  $region1: #{tpu_custom_call.1} parent=0
    #allocation2 [shape = 'u8[16384]{0}', space=vmem, size = 0x4000, scoped, tag = 'output window, operand 0']
    #allocation3 [shape = 's32[2]{0}', space=sflag, size = 0x8, scoped, tag = 'scoped memory for tpu_custom_call.1']
    %10 = vsyncpa [#allocation3], 0
    %s11 = scalar_lea.sflag [#allocation3], 1
    %12 = vsyncpa %s11, 0
    loop: start=0, step=1, limit=4
    $region2: #{tpu_custom_call.1} parent=1 // loop_pre_header
      _
    $region3: #{tpu_custom_call.1} parent=1 // loop_header
      %s14 = sphi 0, %s18
      %p15 = scmp.ge.s32.totalorder %s14, 4
      %s24 = sphi 0, %s26
      %s27 = sphi 0, %s24
      %s28 = sphi 0, %s27
      %s44 = sphi 0, %s28
      %s48 = sphi 0, %s48
      %s50 = sphi 0, %s48
      %s51 = sphi 0, %s50
      %s65 = sphi 0, %s51
      %s69 = sphi 0, %s69
      %s71 = sphi 0, %s69
      %s72 = sphi 0, %s71
      %s86 = sphi 0, %s72
      %s90 = sphi 0, %s90
      %s92 = sphi 0, %s90
      %s93 = sphi 0, %s92
      %s107 = sphi 0, %s93
      %s111 = sphi 0, %s111
      %s113 = sphi 0, %s111
      %s114 = sphi 0, %s113
      %s128 = sphi 0, %s114
      %s134 = sphi 0, %s136
      %s137 = sphi 0, %s134
      %s138 = sphi 0, %s137
      %s154 = sphi 0, %s138
    $region4: #{tpu_custom_call.1} parent=1 // loop_header_branch
      %17 = sbr.rel (%p15) target = $region8
    $region5: #{tpu_custom_call.1} parent=1 // loop_body
      %s19 = ssub.s32 %s14, 1
      %s20 = ssub.s32 %s14, 2
      %s21 = sadd.s32 %s14, 1
      %s22 = ssub.s32 %s14, %s21
      %p23 = scmp.eq.s32.totalorder %s22, 0
      %s25 = sadd.s32 %s24, 1
      %s26 = scalar_select %p23, %s24, %s25
      %p29 = pneg %p23
      %p30 = scmp.eq.s32.totalorder %s14, 1
      %p31 = por %p29, %p30
      %p32 = scmp.ne.s32.totalorder %s24, %s27
      %p33 = scmp.eq.s32.totalorder %s14, 0
      %p34 = por %p32, %p33
      %p35 = scmp.ne.s32.totalorder %s24, %s27
      %p36 = scmp.eq.s32.totalorder %s19, 1
      %p37 = por %p35, %p36
      %p38 = scmp.ne.s32.totalorder %s27, %s28
      %p39 = scmp.eq.s32.totalorder %s19, 0
      %p40 = por %p38, %p39
      %p41 = scmp.ne.s32.totalorder %s27, %s28
      %p42 = scmp.eq.s32.totalorder %s20, 1
      %p43 = por %p41, %p42
      %p45 = scmp.ne.s32.totalorder %s28, %s44
      %p46 = scmp.eq.s32.totalorder %s20, 0
      %p47 = por %p45, %p46
      %s49 = sadd.s32 %s48, 1
      %p52 = scmp.eq.s32.totalorder %s14, 1
      %p53 = scmp.ne.s32.totalorder %s48, %s50
      %p54 = scmp.eq.s32.totalorder %s14, 0
      %p55 = por %p53, %p54
      %p56 = scmp.ne.s32.totalorder %s48, %s50
      %p57 = scmp.eq.s32.totalorder %s19, 1
      %p58 = por %p56, %p57
      %p59 = scmp.ne.s32.totalorder %s50, %s51
      %p60 = scmp.eq.s32.totalorder %s19, 0
      %p61 = por %p59, %p60
      %p62 = scmp.ne.s32.totalorder %s50, %s51
      %p63 = scmp.eq.s32.totalorder %s20, 1
      %p64 = por %p62, %p63
      %p66 = scmp.ne.s32.totalorder %s51, %s65
      %p67 = scmp.eq.s32.totalorder %s20, 0
      %p68 = por %p66, %p67
      %s70 = sadd.s32 %s69, 1
      %p73 = scmp.eq.s32.totalorder %s14, 1
      %p74 = scmp.ne.s32.totalorder %s69, %s71
      %p75 = scmp.eq.s32.totalorder %s14, 0
      %p76 = por %p74, %p75
      %p77 = scmp.ne.s32.totalorder %s69, %s71
      %p78 = scmp.eq.s32.totalorder %s19, 1
      %p79 = por %p77, %p78
      %p80 = scmp.ne.s32.totalorder %s71, %s72
      %p81 = scmp.eq.s32.totalorder %s19, 0
      %p82 = por %p80, %p81
      %p83 = scmp.ne.s32.totalorder %s71, %s72
      %p84 = scmp.eq.s32.totalorder %s20, 1
      %p85 = por %p83, %p84
      %p87 = scmp.ne.s32.totalorder %s72, %s86
      %p88 = scmp.eq.s32.totalorder %s20, 0
      %p89 = por %p87, %p88
      %s91 = sadd.s32 %s90, 1
      %p94 = scmp.eq.s32.totalorder %s14, 1
      %p95 = scmp.ne.s32.totalorder %s90, %s92
      %p96 = scmp.eq.s32.totalorder %s14, 0
      %p97 = por %p95, %p96
      %p98 = scmp.ne.s32.totalorder %s90, %s92
      %p99 = scmp.eq.s32.totalorder %s19, 1
      %p100 = por %p98, %p99
      %p101 = scmp.ne.s32.totalorder %s92, %s93
      %p102 = scmp.eq.s32.totalorder %s19, 0
      %p103 = por %p101, %p102
      %p104 = scmp.ne.s32.totalorder %s92, %s93
      %p105 = scmp.eq.s32.totalorder %s20, 1
      %p106 = por %p104, %p105
      %p108 = scmp.ne.s32.totalorder %s93, %s107
      %p109 = scmp.eq.s32.totalorder %s20, 0
      %p110 = por %p108, %p109
      %s112 = sadd.s32 %s111, 1
      %p115 = scmp.eq.s32.totalorder %s14, 1
      %p116 = scmp.ne.s32.totalorder %s111, %s113
      %p117 = scmp.eq.s32.totalorder %s14, 0
      %p118 = por %p116, %p117
      %p119 = scmp.ne.s32.totalorder %s111, %s113
      %p120 = scmp.eq.s32.totalorder %s19, 1
      %p121 = por %p119, %p120
      %p122 = scmp.ne.s32.totalorder %s113, %s114
      %p123 = scmp.eq.s32.totalorder %s19, 0
      %p124 = por %p122, %p123
      %p125 = scmp.ne.s32.totalorder %s113, %s114
      %p126 = scmp.eq.s32.totalorder %s20, 1
      %p127 = por %p125, %p126
      %p129 = scmp.ne.s32.totalorder %s114, %s128
      %p130 = scmp.eq.s32.totalorder %s20, 0
      %p131 = por %p129, %p130
      %s132 = ssub.s32 %s14, %s21
      %p133 = scmp.eq.s32.totalorder %s132, 0
      %s135 = sadd.s32 %s134, 1
      %s136 = scalar_select %p133, %s134, %s135
      %p139 = pneg %p133
      %p140 = scmp.eq.s32.totalorder %s14, 1
      %p141 = por %p139, %p140
      %p142 = scmp.ne.s32.totalorder %s134, %s137
      %p143 = scmp.eq.s32.totalorder %s14, 0
      %p144 = por %p142, %p143
      %p145 = scmp.ne.s32.totalorder %s134, %s137
      %p146 = scmp.eq.s32.totalorder %s19, 1
      %p147 = por %p145, %p146
      %p148 = scmp.ne.s32.totalorder %s137, %s138
      %p149 = scmp.eq.s32.totalorder %s19, 0
      %p150 = por %p148, %p149
      %p151 = scmp.ne.s32.totalorder %s137, %s138
      %p152 = scmp.eq.s32.totalorder %s20, 1
      %p153 = por %p151, %p152
      %p155 = scmp.ne.s32.totalorder %s138, %s154
      %p156 = scmp.eq.s32.totalorder %s20, 0
      %p157 = por %p155, %p156
      %p158 = scmp.le.s32.totalorder 1, %s14
      %p159 = scmp.lt.s32.totalorder %s14, 3
      %p160 = pnand %p158, %p159
      %p161 = pneg %p160
      // Predicated region
      $region9: #{tpu_custom_call.1} parent=5 // pred_check
        _
      $region10: #{tpu_custom_call.1} parent=5 // pred_check_branch
        %163 = sbr.rel (%p160) target = $region12
      $region11: #{tpu_custom_call.1} parent=5 // pred_region
        %s164 = ssub.s32 %s14, 1
        // Predicated region
        $region13: #{tpu_custom_call.1} parent=11 // pred_check
          %p165 = pneg %p61
        $region14: #{tpu_custom_call.1} parent=11 // pred_check_branch
          %167 = sbr.rel (%p165) target = $region16
        $region15: #{tpu_custom_call.1} parent=11 // pred_region
          _
        $region16: #{tpu_custom_call.1} parent=11 // pred_fallthru
          _
        // Predicated region
        $region17: #{tpu_custom_call.1} parent=11 // pred_check
          %p168 = pneg %p82
        $region18: #{tpu_custom_call.1} parent=11 // pred_check_branch
          %170 = sbr.rel (%p168) target = $region20
        $region19: #{tpu_custom_call.1} parent=11 // pred_region
          _
        $region20: #{tpu_custom_call.1} parent=11 // pred_fallthru
          _
        // Predicated region
        $region21: #{tpu_custom_call.1} parent=11 // pred_check
          %p171 = pneg %p103
        $region22: #{tpu_custom_call.1} parent=11 // pred_check_branch
          %173 = sbr.rel (%p171) target = $region24
        $region23: #{tpu_custom_call.1} parent=11 // pred_region
          _
        $region24: #{tpu_custom_call.1} parent=11 // pred_fallthru
          _
        // Predicated region
        $region25: #{tpu_custom_call.1} parent=11 // pred_check
          %p174 = pneg %p124
        $region26: #{tpu_custom_call.1} parent=11 // pred_check_branch
          %176 = sbr.rel (%p174) target = $region28
        $region27: #{tpu_custom_call.1} parent=11 // pred_region
          _
        $region28: #{tpu_custom_call.1} parent=11 // pred_fallthru
          _
      $region12: #{tpu_custom_call.1} parent=5 // pred_fallthru
        _
      %p177 = scmp.lt.s32.totalorder %s14, 2
      // Predicated region
      $region29: #{tpu_custom_call.1} parent=5 // pred_check
        %p178 = pneg %p177
      $region30: #{tpu_custom_call.1} parent=5 // pred_check_branch
        %180 = sbr.rel (%p178) target = $region32
      $region31: #{tpu_custom_call.1} parent=5 // pred_region
        // Predicated region
        $region33: #{tpu_custom_call.1} parent=31 // pred_check
          %p181 = pneg %p34
        $region34: #{tpu_custom_call.1} parent=31 // pred_check_branch
          %183 = sbr.rel (%p181) target = $region36
        $region35: #{tpu_custom_call.1} parent=31 // pred_region
          %p184 = scmp.lt.s32.totalorder %s14, 1
          %s185 = scalar_select %p184, %s14, 1
          %s186 = smul.addr %s185, 2
          %s187 = smul.addr %s186, 4
          %s188 = scalar_lea.vmem %s0, %s187
        $region36: #{tpu_custom_call.1} parent=31 // pred_fallthru
          _
      $region32: #{tpu_custom_call.1} parent=5 // pred_fallthru
        _
      %p189 = scmp.le.s32.totalorder 1, %s14
      %p190 = scmp.lt.s32.totalorder %s14, 3
      %p191 = pnand %p189, %p190
      %p192 = pneg %p191
      // Predicated region
      $region37: #{tpu_custom_call.1} parent=5 // pred_check
        _
      $region38: #{tpu_custom_call.1} parent=5 // pred_check_branch
        %194 = sbr.rel (%p191) target = $region40
      $region39: #{tpu_custom_call.1} parent=5 // pred_region
        %s195 = ssub.s32 %s14, 1
        %p196 = scmp.lt.s32.totalorder %s19, 1
        %s197 = scalar_select %p196, %s19, 1
        %s198 = smul.addr %s197, 2
        %s199 = smul.addr %s198, 4
        %s200 = scalar_lea.vmem %s0, %s199
        %p201 = pneg %p40
        %p202 = pneg %p37
        %p203 = pneg %p61
        %p204 = pneg %p58
        %p205 = pneg %p82
        %p206 = pneg %p79
        %p207 = pneg %p103
        %p208 = pneg %p100
        %p209 = pneg %p124
        %p210 = pneg %p121
        %p211 = pneg %p150
        %p212 = pneg %p147
        %s213 = sand.u32 %s137, 1
        %s214 = scalar_lea.sflag [#allocation3], %s213
        %s215 = sand.u32 %s137, 1
        %s216 = smul.addr %s215, 16
        %s217 = scalar_lea.vmem [#allocation2], %s216
        %p218 = scmp.lt.s32.totalorder %s19, 1
        %s219 = scalar_select %p218, %s19, 1
        %s220 = smul.addr %s219, 2
        %s221 = smul.addr %s220, 4
        %s222 = scalar_lea.vmem %s0, %s221
        %v223 = vld [vmem:[%s222] sm:$0xff]
        %v224 = vld [vmem:[%s1] sm:$0xf]
        %v225 = vlaneseq
        %v226 = vand.u32 %v225, 127
        %v227 = vadd.s32 %v226, 128
        %v228 = vand.u32 %v226, 15
        %v229 = vand.u32 %v227, 15
        %vm230 = vcmp.ge.s32.totalorder %v226, 16
        %vm231 = vcmp.ge.s32.totalorder %v227, 16
        %vm232 = vcmp.lt.s32.totalorder %v226, 240
        %vm233 = vcmp.lt.s32.totalorder %v227, 240
        %vm234 = vcmp.ge.s32.totalorder %v228, 1
        %vm235 = vcmp.ge.s32.totalorder %v229, 1
        %vm236 = vcmp.le.s32.totalorder %v228, 14
        %vm237 = vcmp.le.s32.totalorder %v229, 14
        %v239 = vcombine.high %v223, %v223
        %241 = vrot.lane.b32.xlu0 %v223, 17
        %v242 = vpop.permute.xlu0 %241
        %243 = vrot.lane.b32.xlu0 %v239, 17
        %v244 = vpop.permute.xlu0 %243
        %vm245 = vcmp.lt.s32.totalorder %v226, 17
        %v246 = vsel %vm245, %v242, %v244
        %v247 = vsel %vm245, %v244, %v242
        %vm248 = vmand %vm230, %vm234
        %vm249 = vmand %vm231, %vm235
        %v250 = vsel %vm248, %v247, 0.0
        %v251 = vsel %vm249, %v246, 0.0
        %253 = vset.pattern.permute.xlu0 0
        %254 = vperm.xlu0 %253, %v224
        %v255 = vpop.permute.xlu0 %254
        %v257 = vmul.f32 %v250, %v255
        %v258 = vmul.f32 %v251, %v255
        %v259 = vadd.f32 %v257, 0.0
        %v260 = vadd.f32 %v258, 0.0
        %261 = vrot.lane.b32.xlu0 %v223, 16
        %v262 = vpop.permute.xlu0 %261
        %263 = vrot.lane.b32.xlu0 %v239, 16
        %v264 = vpop.permute.xlu0 %263
        %vm265 = vcmp.lt.s32.totalorder %v226, 16
        %v266 = vsel %vm265, %v262, %v264
        %v267 = vsel %vm265, %v264, %v262
        %v268 = vsel %vm230, %v267, 0.0
        %v269 = vsel %vm231, %v266, 0.0
        %270 = vset.pattern.permute.xlu0 1
        %271 = vperm.xlu0 %270, %v224
        %v272 = vpop.permute.xlu0 %271
        %v274 = vmul.f32 %v268, %v272
        %v275 = vmul.f32 %v269, %v272
        %v276 = vadd.f32 %v259, %v274
        %v277 = vadd.f32 %v260, %v275
        %278 = vrot.lane.b32.xlu0 %v223, 15
        %v279 = vpop.permute.xlu0 %278
        %280 = vrot.lane.b32.xlu0 %v239, 15
        %v281 = vpop.permute.xlu0 %280
        %vm282 = vcmp.lt.s32.totalorder %v226, 15
        %v283 = vsel %vm282, %v279, %v281
        %v284 = vsel %vm282, %v281, %v279
        %vm285 = vmand %vm230, %vm236
        %vm286 = vmand %vm231, %vm237
        %v287 = vsel %vm285, %v284, 0.0
        %v288 = vsel %vm286, %v283, 0.0
        %289 = vset.pattern.permute.xlu0 2
        %290 = vperm.xlu0 %289, %v224
        %v291 = vpop.permute.xlu0 %290
        %v293 = vmul.f32 %v287, %v291
        %v294 = vmul.f32 %v288, %v291
        %v295 = vadd.f32 %v276, %v293
        %v296 = vadd.f32 %v277, %v294
        %297 = vrot.lane.b32.xlu0 %v223, 1
        %v298 = vpop.permute.xlu0 %297
        %299 = vrot.lane.b32.xlu0 %v239, 1
        %v300 = vpop.permute.xlu0 %299
        %vm301 = vcmp.lt.s32.totalorder %v226, 1
        %v302 = vsel %vm301, %v298, %v300
        %v303 = vsel %vm301, %v300, %v298
        %v304 = vsel %vm234, %v303, 0.0
        %v305 = vsel %vm235, %v302, 0.0
        %306 = vset.pattern.permute.xlu0 3
        %307 = vperm.xlu0 %306, %v224
        %v308 = vpop.permute.xlu0 %307
        %v310 = vmul.f32 %v304, %v308
        %v311 = vmul.f32 %v305, %v308
        %v312 = vadd.f32 %v295, %v310
        %v313 = vadd.f32 %v296, %v311
        %314 = vset.pattern.permute.xlu0 4
        %315 = vperm.xlu0 %314, %v224
        %v316 = vpop.permute.xlu0 %315
        %v318 = vunpack.c.l.s4 839922192
        %v319 = vunpack.c.0.s8 %v318
        %v320 = vlaneseq
        %v321 = vshrl.u32 %v320, 7
        %v322 = vsub.s32 %v319, %v321
        %v323 = vrot.slane %v316, %v322
        %v325 = vmul.f32 %v223, %v323
        %v327 = vcombine.high %v325, %v325
        %v329 = vadd.f32 %v312, %v325
        %v330 = vadd.f32 %v313, %v327
        %331 = vrot.lane.b32.xlu0 %v223, 127
        %v332 = vpop.permute.xlu0 %331
        %333 = vrot.lane.b32.xlu0 %v239, 127
        %v334 = vpop.permute.xlu0 %333
        %vm335 = vcmp.lt.s32.totalorder %v226, 127
        %v336 = vsel %vm335, %v332, %v334
        %v337 = vsel %vm335, %v334, %v332
        %v338 = vsel %vm236, %v336, 0.0
        %v339 = vsel %vm237, %v337, 0.0
        %340 = vset.pattern.permute.xlu0 5
        %341 = vperm.xlu0 %340, %v224
        %v342 = vpop.permute.xlu0 %341
        %v344 = vmul.f32 %v338, %v342
        %v345 = vmul.f32 %v339, %v342
        %v346 = vadd.f32 %v329, %v344
        %v347 = vadd.f32 %v330, %v345
        %348 = vrot.lane.b32.xlu0 %v223, 113
        %v349 = vpop.permute.xlu0 %348
        %350 = vrot.lane.b32.xlu0 %v239, 113
        %v351 = vpop.permute.xlu0 %350
        %vm352 = vcmp.lt.s32.totalorder %v226, 113
        %v353 = vsel %vm352, %v349, %v351
        %v354 = vsel %vm352, %v351, %v349
        %vm355 = vmand %vm232, %vm234
        %vm356 = vmand %vm233, %vm235
        %v357 = vsel %vm355, %v353, 0.0
        %v358 = vsel %vm356, %v354, 0.0
        %359 = vset.pattern.permute.xlu0 6
        %360 = vperm.xlu0 %359, %v224
        %v361 = vpop.permute.xlu0 %360
        %v363 = vmul.f32 %v357, %v361
        %v364 = vmul.f32 %v358, %v361
        %v365 = vadd.f32 %v346, %v363
        %v366 = vadd.f32 %v347, %v364
        %367 = vrot.lane.b32.xlu0 %v223, 112
        %v368 = vpop.permute.xlu0 %367
        %369 = vrot.lane.b32.xlu0 %v239, 112
        %v370 = vpop.permute.xlu0 %369
        %vm371 = vcmp.lt.s32.totalorder %v226, 112
        %v372 = vsel %vm371, %v368, %v370
        %v373 = vsel %vm371, %v370, %v368
        %v374 = vsel %vm232, %v372, 0.0
        %v375 = vsel %vm233, %v373, 0.0
        %376 = vset.pattern.permute.xlu0 7
        %377 = vperm.xlu0 %376, %v224
        %v378 = vpop.permute.xlu0 %377
        %v380 = vmul.f32 %v374, %v378
        %v381 = vmul.f32 %v375, %v378
        %v382 = vadd.f32 %v365, %v380
        %v383 = vadd.f32 %v366, %v381
        %384 = vrot.lane.b32.xlu0 %v223, 111
        %v385 = vpop.permute.xlu0 %384
        %386 = vrot.lane.b32.xlu0 %v239, 111
        %v387 = vpop.permute.xlu0 %386
        %vm388 = vcmp.lt.s32.totalorder %v226, 111
        %v389 = vsel %vm388, %v385, %v387
        %v390 = vsel %vm388, %v387, %v385
        %vm391 = vmand %vm232, %vm236
        %vm392 = vmand %vm233, %vm237
        %v393 = vsel %vm391, %v389, 0.0
        %v394 = vsel %vm392, %v390, 0.0
        %395 = vset.pattern.permute.xlu0 8
        %396 = vperm.xlu0 %395, %v224
        %v397 = vpop.permute.xlu0 %396
        %v399 = vmul.f32 %v393, %v397
        %v400 = vmul.f32 %v394, %v397
        %v401 = vadd.f32 %v382, %v399
        %v402 = vadd.f32 %v383, %v400
        %v403 = vld [vmem:[%s2] sm:$0xf]
        %405 = vset.pattern.permute.xlu0 0
        %406 = vperm.xlu0 %405, %v403
        %v407 = vpop.permute.xlu0 %406
        %v409 = vadd.f32 %v401, %v407
        %v410 = vadd.f32 %v402, %v407
        %v411 = vld [vmem:[%s3] sm:$0xff]
        %413 = vset.pattern.permute.xlu0 0
        %414 = vperm.xlu0 %413, %v411
        %v415 = vpop.permute.xlu0 %414
        %v417 = vlaneseq
        %v418 = vshrl.u32 %v417, 7
        %v419 = vsub.s32 0, %v418
        %v420 = vrot.slane %v409, %v419
        %v421 = vlaneseq
        %v422 = vshrl.u32 %v421, 7
        %v423 = vsub.s32 0, %v422
        %v424 = vrot.slane %v410, %v423
        %v425 = vmul.f32 %v415, %v420
        %v426 = vmul.f32 %v415, %v424
        %v427 = vadd.f32 %v425, 0.0
        %v428 = vadd.f32 %v426, 0.0
        %429 = vset.pattern.permute.xlu0 1
        %430 = vperm.xlu0 %429, %v411
        %v431 = vpop.permute.xlu0 %430
        %v433 = vlaneseq
        %v434 = vshrl.u32 %v433, 7
        %v435 = vsub.s32 1, %v434
        %v436 = vrot.slane %v409, %v435
        %v437 = vlaneseq
        %v438 = vshrl.u32 %v437, 7
        %v439 = vsub.s32 1, %v438
        %v440 = vrot.slane %v410, %v439
        %v441 = vmul.f32 %v431, %v436
        %v442 = vmul.f32 %v431, %v440
        %v443 = vadd.f32 %v427, %v441
        %v444 = vadd.f32 %v428, %v442
        %445 = vset.pattern.permute.xlu0 2
        %446 = vperm.xlu0 %445, %v411
        %v447 = vpop.permute.xlu0 %446
        %v449 = vlaneseq
        %v450 = vshrl.u32 %v449, 7
        %v451 = vsub.s32 2, %v450
        %v452 = vrot.slane %v409, %v451
        %v453 = vlaneseq
        %v454 = vshrl.u32 %v453, 7
        %v455 = vsub.s32 2, %v454
        %v456 = vrot.slane %v410, %v455
        %v457 = vmul.f32 %v447, %v452
        %v458 = vmul.f32 %v447, %v456
        %v459 = vadd.f32 %v443, %v457
        %v460 = vadd.f32 %v444, %v458
        %461 = vset.pattern.permute.xlu0 3
        %462 = vperm.xlu0 %461, %v411
        %v463 = vpop.permute.xlu0 %462
        %v465 = vlaneseq
        %v466 = vshrl.u32 %v465, 7
        %v467 = vsub.s32 3, %v466
        %v468 = vrot.slane %v409, %v467
        %v469 = vlaneseq
        %v470 = vshrl.u32 %v469, 7
        %v471 = vsub.s32 3, %v470
        %v472 = vrot.slane %v410, %v471
        %v473 = vmul.f32 %v463, %v468
        %v474 = vmul.f32 %v463, %v472
        %v475 = vadd.f32 %v459, %v473
        %v476 = vadd.f32 %v460, %v474
        %v477 = vld [vmem:[%s4] sm:$0xff]
        %479 = vset.pattern.permute.xlu0 0
        %480 = vperm.xlu0 %479, %v477
        %v481 = vpop.permute.xlu0 %480
        %v483 = vadd.f32 %v475, %v481
        %v484 = vadd.f32 %v476, %v481
        %485 = vst [vmem:[%s217] sm:$0xff] %v483
        %486 = vst [vmem:[%s217 + $0x8] sm:$0xff] %v484
        %s487 = sand.u32 %s137, 1
        %s488 = scalar_lea.sflag [#allocation3], %s487
        %s489 = sand.u32 %s137, 1
        %s490 = smul.addr %s489, 16
        %s491 = scalar_lea.vmem [#allocation2], %s490
        // Predicated region
        $region41: #{tpu_custom_call.1} parent=39 // pred_check
          %p492 = pneg %p147
        $region42: #{tpu_custom_call.1} parent=39 // pred_check_branch
          %494 = sbr.rel (%p492) target = $region44
        $region43: #{tpu_custom_call.1} parent=39 // pred_region
          %s496 = ssub.s32 256, 256
          %497 = vsyncadd %s488, %s496
          %s498 = smul.addr %s19, 2
          %s499 = smul.addr %s498, 128
          %s500 = scalar_lea.hbm %s5, %s499
          %s502 = sshll.u32 %s491, 4
          %s503 = int_to_ptr.vmem [resolvable:$true] %s502
          %505 = dma.vmem_to_hbm [thread:$0]  %s503, 256, %s500, %s488
        $region44: #{tpu_custom_call.1} parent=39 // pred_fallthru
          _
      $region40: #{tpu_custom_call.1} parent=5 // pred_fallthru
        _
      %p506 = scmp.le.s32.totalorder 2, %s14
      // Predicated region
      $region45: #{tpu_custom_call.1} parent=5 // pred_check
        %p507 = pneg %p506
      $region46: #{tpu_custom_call.1} parent=5 // pred_check_branch
        %509 = sbr.rel (%p507) target = $region48
      $region47: #{tpu_custom_call.1} parent=5 // pred_region
        %s510 = ssub.s32 %s14, 2
        // Predicated region
        $region49: #{tpu_custom_call.1} parent=47 // pred_check
          %p511 = pneg %p153
        $region50: #{tpu_custom_call.1} parent=47 // pred_check_branch
          %513 = sbr.rel (%p511) target = $region52
        $region51: #{tpu_custom_call.1} parent=47 // pred_region
          %s514 = sand.u32 %s138, 1
          %s515 = scalar_lea.sflag [#allocation3], %s514
          %s516 = sand.u32 %s138, 1
          %s517 = smul.addr %s516, 16
          %s518 = scalar_lea.vmem [#allocation2], %s517
          %519 = dma.done %s515, 256
        $region52: #{tpu_custom_call.1} parent=47 // pred_fallthru
          _
      $region48: #{tpu_custom_call.1} parent=5 // pred_fallthru
        _
    $region6: #{tpu_custom_call.1} parent=1 // loop_footer
      %s18 = sadd.s32 1, %s14
    $region7: #{tpu_custom_call.1} parent=1 // loop_footer_branch
      %13 = sbr.rel target = $region3
    $region8: #{tpu_custom_call.1} parent=1 // loop_exit
      _
    %520 = vsyncpa [#allocation3], 1
    %s521 = scalar_lea.sflag [#allocation3], 1
    %522 = vsyncpa %s521, 1

</llo_original>
